<compile_context>
chip_gen: v6e
topology: v6e:2x2x1
jax: 0.10.0
libtpu: 0.0.40
codegen_flags: <defaults>
</compile_context>

<pallas_src>
import math

import jax
import jax.numpy as jnp
from jax.experimental import pallas as pl
from jax.experimental.pallas import tpu as pltpu


# ----------------------------------------------------------------------------- kernel
def distmult_kernel(hr_ref, x_ref, out_ref):
    """One lane-dense N-tile of sigmoid(hr @ X.T).

    hr_ref : (B, D)   bf16  VMEM-resident (BatchNorm already folded in wrapper)
    x_ref  : (D, TN)  bf16  streamed lane-dense tile of the pre-transposed table
    out_ref: (B, TN)        lane-dense output tile
    """
    logits = jnp.dot(hr_ref[...], x_ref[...],
                     preferred_element_type=jnp.float32)          # MXU, f32 acc
    out_ref[...] = jax.nn.sigmoid(logits).astype(out_ref.dtype)   # EUP slot


# ----------------------------------------------------------------------------- planning / preprocessing
def _round_up(x, m):
    return ((x + m - 1) // m) * m


def _round_down(x, m):
    return (x // m) * m


def _vmem_budget_bytes():
    """Generation-aware VMEM budget for tiling (per TensorCore)."""
    cap = None
    try:
        info = pltpu.get_tpu_info()
        cap = getattr(info, "vmem_capacity_bytes", None)
    except Exception:
        cap = None
    if cap is None:
        cap = 64 << 20                      # conservative fallback (v7x per-TC)
    if cap <= (64 << 20):
        return 40 << 20                     # v7x: 64 MiB physical, keep headroom
    return 96 << 20                         # v5e / v6e: 128 MiB physical


def plan_tile_n(batch, emb_dim, n_entities, out_dtype=jnp.bfloat16):
    """Pick the lane-dense output tile width from the VMEM budget."""
    out_bytes = jnp.dtype(out_dtype).itemsize
    budget = _vmem_budget_bytes()
    resident = 2 * batch * emb_dim * 2 + (2 << 20)        # hr + headroom
    per_col = 2 * (emb_dim * 2 + batch * out_bytes)       # double-buffered X col + out col
    tile_n = _round_down(max((budget - resident) // per_col, 128), 128)

    n128 = _round_up(n_entities, 128)
    # Keep >= ~4 balanced tiles (when N allows) so v7x's 2 TensorCores both work.
    quarter = max(_round_down(n128 // 4, 128), 128)
    tile_n = max(min(tile_n, quarter, n128), 128)
    return int(tile_n)


def fold_batchnorm(gamma, beta, running_mean, running_var, eps=1e-5):
    """Eval-mode BatchNorm1d -> per-feature (scale, bias)."""
    inv_std = 1.0 / jnp.sqrt(running_var.astype(jnp.float32) + eps)
    scale = gamma.astype(jnp.float32) * inv_std
    bias = beta.astype(jnp.float32) - running_mean.astype(jnp.float32) * scale
    return scale, bias


def prepare_entity_table(x, tile_n):
    """One-time preprocessing of the entity-embedding parameter:
    bf16 cast, transpose to lane-dense (D, N), pad N up to a tile multiple."""
    n, d = x.shape
    padded_n = _round_up(n, tile_n)
    x_t = x.astype(jnp.bfloat16).T                         # (D, N), lane-dense
    if padded_n != n:
        x_t = jnp.pad(x_t, ((0, 0), (0, padded_n - n)))
    return x_t


# ----------------------------------------------------------------------------- forward
def distmult_forward(h, r, x_t, n_entities, bn_scale, bn_bias, *,
                     tile_n, out_dtype=jnp.bfloat16):
    """h, r: (B, D); x_t: pre-transposed padded bf16 table (D, padded_N).

    Returns sigmoid(bn(h*r) @ X.T) with shape (B, n_entities) in out_dtype.
    """
    B, D = h.shape
    Dx, padded_n = x_t.shape
    assert Dx == D and padded_n % tile_n == 0 and padded_n >= n_entities

    # h*r + eval-mode BN fold, done once per call (tiny (B, D) op), f32 VPU math
    # until the matmul boundary, then one bf16 cast for the MXU.
    hr = (h.astype(jnp.float32) * r.astype(jnp.float32)) * bn_scale + bn_bias
    hr = hr.astype(jnp.bfloat16)

    n_tiles = padded_n // tile_n

    # VMEM sizing: double-buffered X tile + output tile, resident hr, headroom.
    x_tile_bytes = D * tile_n * 2
    out_tile_bytes = B * tile_n * jnp.dtype(out_dtype).itemsize
    vmem_limit = 2 * (x_tile_bytes + out_tile_bytes) + 2 * B * D * 2 + (2 << 20)
    vmem_limit = int(min(max(vmem_limit, 16 << 20), _vmem_budget_bytes()))

    return pl.pallas_call(
        distmult_kernel,
        out_shape=jax.ShapeDtypeStruct((B, n_entities), out_dtype),
        grid=(n_tiles,),
        in_specs=[
            pl.BlockSpec((B, D), lambda i: (0, 0)),        # hr: VMEM-resident
            pl.BlockSpec((D, tile_n), lambda i: (0, i)),   # X^T: streamed lane-dense tiles
        ],
        out_specs=pl.BlockSpec((B, tile_n), lambda i: (0, i)),
        compiler_params=pltpu.CompilerParams(
            dimension_semantics=("parallel",),             # shards N tiles across v7x's 2 TCs
            vmem_limit_bytes=vmem_limit,
        ),
    )(hr, x_t)


# ----------------------------------------------------------------------------- demo / check
def xavier_normal(key, shape):
    fan_out, fan_in = shape  # Embedding weight (num_embeddings, emb_dim)
    std = math.sqrt(2.0 / (fan_in + fan_out))
    return jax.random.normal(key, shape, dtype=jnp.float32) * std


if __name__ == "__main__":
    emb_dim = 32
    n_entities = 200       # not a multiple of 128: exercises the masked final output tile
    n_relations = 8
    batch = 8

    key = jax.random.PRNGKey(0)
    k_ent, k_rel, k_e1, k_r = jax.random.split(key, 4)

    # Parameters (deterministic, xavier-normal like the module's __init__).
    entity_embeddings = xavier_normal(k_ent, (n_entities, emb_dim))
    relation_embeddings = xavier_normal(k_rel, (n_relations, emb_dim))
    # BatchNorm1d default params / running stats.
    gamma = jnp.ones((emb_dim,), jnp.float32)
    beta = jnp.zeros((emb_dim,), jnp.float32)
    running_mean = jnp.zeros((emb_dim,), jnp.float32)
    running_var = jnp.ones((emb_dim,), jnp.float32)

    # Inputs.
    e1_idx = jax.random.randint(k_e1, (batch,), 0, n_entities)
    r_idx = jax.random.randint(k_r, (batch,), 0, n_relations)
    lst_ents = jnp.arange(n_entities, dtype=jnp.int32)

    # Embedding gathers (glue, plain JAX).
    X = entity_embeddings[lst_ents]          # (N, D)
    h = entity_embeddings[e1_idx]            # (B, D)
    r = relation_embeddings[r_idx]           # (B, D)

    # One-time parameter-style preprocessing, hoisted out of the forward path.
    tile_n = plan_tile_n(batch, emb_dim, n_entities)
    x_t = prepare_entity_table(X, tile_n)
    bn_scale, bn_bias = fold_batchnorm(gamma, beta, running_mean, running_var)

    pred = distmult_forward(h, r, x_t, n_entities, bn_scale, bn_bias, tile_n=tile_n)
    pred = jax.block_until_ready(pred)

    # Pure-JAX reference (eval-mode BN + sigmoid(hr @ X.T)), f32.
    eps = 1e-5
    inv_std = 1.0 / jnp.sqrt(running_var + eps)
    hr_ref = (h * r) * (gamma * inv_std) + (beta - running_mean * gamma * inv_std)
    pred_ref = jax.nn.sigmoid(hr_ref @ X.T)

    assert pred.shape == (batch, n_entities)
    # hr and X go through bf16 (f32 MXU accumulation) and the output is stored in
    # bf16 -> allow ~1e-2-level deviation from the pure-f32 reference.
    assert jnp.allclose(pred.astype(jnp.float32), pred_ref, atol=2e-2, rtol=2e-2)

    print("KERNEL_OK")
</pallas_src>

<mosaic_0001>
module attributes {stable_mosaic.version = 11 : i64} {
  func.func @distmult_kernel(%arg0: i32, %arg1: memref<8x32xbf16, #tpu.memory_space<vmem>>, %arg2: memref<32x128xbf16, #tpu.memory_space<vmem>>, %arg3: memref<8x128xbf16, #tpu.memory_space<vmem>>) attributes {dimension_semantics = [#tpu.dimension_semantics<parallel>], iteration_bounds = array<i64: 2>, scalar_prefetch = 0 : i64, scratch_operands = 0 : i64, tpu.core_type = #tpu.core_type<tc>, window_params = [{pipeline_mode = #tpu.pipeline_mode<synchronous>, transform_indices = @transform_0, window_bounds = array<i64: 8, 32>}, {transform_indices = @transform_1, window_bounds = array<i64: 32, 128>}, {transform_indices = @transform_2, window_bounds = array<i64: 8, 128>}]} {
    %c0 = arith.constant 0 : index
    %c0_0 = arith.constant 0 : index
    %0 = vector.load %arg1[%c0, %c0_0] : memref<8x32xbf16, #tpu.memory_space<vmem>>, vector<8x32xbf16>
    %c0_1 = arith.constant 0 : index
    %c0_2 = arith.constant 0 : index
    %1 = vector.load %arg2[%c0_1, %c0_2] : memref<32x128xbf16, #tpu.memory_space<vmem>>, vector<32x128xbf16>
    %cst = arith.constant dense<0.000000e+00> : vector<8x128xf32>
    %2 = tpu.matmul %0, %1, %cst {dimension_numbers = #tpu.dot_dimension_numbers<[1], [0], [0], [1], [0, 0, 1, 1], [], []>} : vector<8x32xbf16>, vector<32x128xbf16>, vector<8x128xf32> -> vector<8x128xf32>
    %3 = arith.negf %2 : vector<8x128xf32>
    %4 = math.exp %3 : vector<8x128xf32>
    %cst_3 = arith.constant 1.000000e+00 : f32
    %5 = vector.broadcast %cst_3 : f32 to vector<8x128xf32>
    %6 = arith.addf %5, %4 : vector<8x128xf32>
    %7 = arith.divf %5, %6 : vector<8x128xf32>
    %8 = arith.truncf %7 : vector<8x128xf32> to vector<8x128xbf16>
    %c0_4 = arith.constant 0 : index
    %c0_5 = arith.constant 0 : index
    %9 = vector.load %arg3[%c0_4, %c0_5] : memref<8x128xbf16, #tpu.memory_space<vmem>>, vector<8x128xbf16>
    tpu.vector_store %arg3[%c0_4, %c0_5], %8 {strides = array<i32>} : memref<8x128xbf16, #tpu.memory_space<vmem>>, vector<8x128xbf16>,
    return
  }
  func.func @transform_0(%arg0: i32) -> (i32, i32) {
    %c0_i32 = arith.constant 0 : i32
    %c0_i32_0 = arith.constant 0 : i32
    %c0_i32_1 = arith.constant 0 : i32
    return %c0_i32, %c0_i32_0 : i32, i32
  }
  func.func @transform_1(%arg0: i32) -> (i32, i32) {
    %c0_i32 = arith.constant 0 : i32
    %c0_i32_0 = arith.constant 0 : i32
    return %c0_i32, %arg0 : i32, i32
  }
  func.func @transform_2(%arg0: i32) -> (i32, i32) {
    %c0_i32 = arith.constant 0 : i32
    %c0_i32_0 = arith.constant 0 : i32
    return %c0_i32, %arg0 : i32, i32
  }
}

</mosaic_0001>

<llo_original>
// kernel: tpu_custom_call.1
$region0: #{tpu_custom_call.1}
  #allocation0 [shape = 'u32[]', space=smem, size = 0x4, offset = 0x4, fixed_abs, tag = 'smem constant byte address 0x4 - core index']
  #allocation1 [shape = 'u32[144,128]{1,0:T(1,128)}', space=vmem, size = 0x12000, scoped, tag = 'internal scratch']
  %s0 = inlined_call_operand.hbm [shape: bf16[8,32], index: 0, kind: input, shape index: {}]
  %s1 = inlined_call_operand.hbm [shape: bf16[32,256], index: 1, kind: input, shape index: {}]
  %s2 = inlined_call_operand.hbm [shape: bf16[8,200], index: 2, kind: output, shape index: {}]
  %s3 = sld [smem:[#allocation0]]
  $region49: #{tpu_custom_call.1} parent=0
    _
  %s5 = ssub.s32 1, %s3
  %s6 = scalar_select 0, %s5, %s3
  $region1: #{tpu_custom_call.1} parent=0
    #allocation2 [shape = 'u8[2048]{0}', space=vmem, size = 0x800, scoped, tag = 'input window, operand 0, single buffered']
    #allocation3 [shape = 's32[2]{0}', space=sflag, size = 0x8, scoped, tag = 'scoped memory for tpu_custom_call.1']
    #allocation4 [shape = 's32[2]{0}', space=sflag, size = 0x8, scoped, tag = 'scoped memory for tpu_custom_call.1']
    #allocation5 [shape = 'u8[16384]{0}', space=vmem, size = 0x4000, scoped, tag = 'input window, operand 1']
    #allocation6 [shape = 's32[2]{0}', space=sflag, size = 0x8, scoped, tag = 'scoped memory for tpu_custom_call.1']
    #allocation7 [shape = 'u8[4096]{0}', space=vmem, size = 0x1000, scoped, tag = 'output window, operand 0']
    %7 = vsyncpa [#allocation3], 0
    %8 = vsyncpa [#allocation6], 0
    %s9 = scalar_lea.sflag [#allocation6], 1
    %10 = vsyncpa %s9, 0
    %11 = vsyncpa [#allocation4], 0
    %s12 = scalar_lea.sflag [#allocation4], 1
    %13 = vsyncpa %s12, 0
    loop: start=0, step=1, limit=4
    $region2: #{tpu_custom_call.1} parent=1 // loop_pre_header
      _
    $region3: #{tpu_custom_call.1} parent=1 // loop_header
      %s15 = sphi 0, %s19
      %p16 = scmp.ge.s32.totalorder %s15, 4
      %s23 = sphi 0, %s23
      %s25 = sphi 0, %s23
      %s26 = sphi 0, %s25
      %s40 = sphi 0, %s26
      %s46 = sphi 0, %s48
      %s49 = sphi 0, %s46
      %s50 = sphi 0, %s49
      %s66 = sphi 0, %s50
      %s72 = sphi 0, %s74
      %s75 = sphi 0, %s72
      %s76 = sphi 0, %s75
      %s92 = sphi 0, %s76
    $region4: #{tpu_custom_call.1} parent=1 // loop_header_branch
      %18 = sbr.rel (%p16) target = $region8
    $region5: #{tpu_custom_call.1} parent=1 // loop_body
      %s20 = ssub.s32 %s15, 1
      %s21 = ssub.s32 %s15, 2
      %s22 = sadd.s32 %s15, 1
      %s24 = sadd.s32 %s23, 1
      %p27 = scmp.eq.s32.totalorder %s15, 1
      %p28 = scmp.ne.s32.totalorder %s23, %s25
      %p29 = scmp.eq.s32.totalorder %s15, 0
      %p30 = por %p28, %p29
      %p31 = scmp.ne.s32.totalorder %s23, %s25
      %p32 = scmp.eq.s32.totalorder %s20, 1
      %p33 = por %p31, %p32
      %p34 = scmp.ne.s32.totalorder %s25, %s26
      %p35 = scmp.eq.s32.totalorder %s20, 0
      %p36 = por %p34, %p35
      %p37 = scmp.ne.s32.totalorder %s25, %s26
      %p38 = scmp.eq.s32.totalorder %s21, 1
      %p39 = por %p37, %p38
      %p41 = scmp.ne.s32.totalorder %s26, %s40
      %p42 = scmp.eq.s32.totalorder %s21, 0
      %p43 = por %p41, %p42
      %s44 = ssub.s32 %s15, %s22
      %p45 = scmp.eq.s32.totalorder %s44, 0
      %s47 = sadd.s32 %s46, 1
      %s48 = scalar_select %p45, %s46, %s47
      %p51 = pneg %p45
      %p52 = scmp.eq.s32.totalorder %s15, 1
      %p53 = por %p51, %p52
      %p54 = scmp.ne.s32.totalorder %s46, %s49
      %p55 = scmp.eq.s32.totalorder %s15, 0
      %p56 = por %p54, %p55
      %p57 = scmp.ne.s32.totalorder %s46, %s49
      %p58 = scmp.eq.s32.totalorder %s20, 1
      %p59 = por %p57, %p58
      %p60 = scmp.ne.s32.totalorder %s49, %s50
      %p61 = scmp.eq.s32.totalorder %s20, 0
      %p62 = por %p60, %p61
      %p63 = scmp.ne.s32.totalorder %s49, %s50
      %p64 = scmp.eq.s32.totalorder %s21, 1
      %p65 = por %p63, %p64
      %p67 = scmp.ne.s32.totalorder %s50, %s66
      %p68 = scmp.eq.s32.totalorder %s21, 0
      %p69 = por %p67, %p68
      %s70 = ssub.s32 %s15, %s22
      %p71 = scmp.eq.s32.totalorder %s70, 0
      %s73 = sadd.s32 %s72, 1
      %s74 = scalar_select %p71, %s72, %s73
      %p77 = pneg %p71
      %p78 = scmp.eq.s32.totalorder %s15, 1
      %p79 = por %p77, %p78
      %p80 = scmp.ne.s32.totalorder %s72, %s75
      %p81 = scmp.eq.s32.totalorder %s15, 0
      %p82 = por %p80, %p81
      %p83 = scmp.ne.s32.totalorder %s72, %s75
      %p84 = scmp.eq.s32.totalorder %s20, 1
      %p85 = por %p83, %p84
      %p86 = scmp.ne.s32.totalorder %s75, %s76
      %p87 = scmp.eq.s32.totalorder %s20, 0
      %p88 = por %p86, %p87
      %p89 = scmp.ne.s32.totalorder %s75, %s76
      %p90 = scmp.eq.s32.totalorder %s21, 1
      %p91 = por %p89, %p90
      %p93 = scmp.ne.s32.totalorder %s76, %s92
      %p94 = scmp.eq.s32.totalorder %s21, 0
      %p95 = por %p93, %p94
      %p96 = scmp.le.s32.totalorder 1, %s15
      %p97 = scmp.lt.s32.totalorder %s15, 3
      %p98 = pnand %p96, %p97
      %p99 = pneg %p98
      // Predicated region
      $region9: #{tpu_custom_call.1} parent=5 // pred_check
        _
      $region10: #{tpu_custom_call.1} parent=5 // pred_check_branch
        %101 = sbr.rel (%p98) target = $region12
      $region11: #{tpu_custom_call.1} parent=5 // pred_region
        %s102 = ssub.s32 %s15, 1
        // Predicated region
        $region13: #{tpu_custom_call.1} parent=11 // pred_check
          %p103 = pneg %p36
        $region14: #{tpu_custom_call.1} parent=11 // pred_check_branch
          %105 = sbr.rel (%p103) target = $region16
        $region15: #{tpu_custom_call.1} parent=11 // pred_region
          %s107 = ssub.s32 64, 64
          %108 = vsyncadd [#allocation3], %s107
          %s110 = sshll.u32 [#allocation2], 4
          %s111 = int_to_ptr.vmem [resolvable:$true] %s110
          %113 = dma.hbm_to_vmem [thread:$0]  %s0, 64, %s111, [#allocation3]
        $region16: #{tpu_custom_call.1} parent=11 // pred_fallthru
          _
      $region12: #{tpu_custom_call.1} parent=5 // pred_fallthru
        _
      %p114 = scmp.lt.s32.totalorder %s15, 2
      // Predicated region
      $region17: #{tpu_custom_call.1} parent=5 // pred_check
        %p115 = pneg %p114
      $region18: #{tpu_custom_call.1} parent=5 // pred_check_branch
        %117 = sbr.rel (%p115) target = $region20
      $region19: #{tpu_custom_call.1} parent=5 // pred_region
        // Predicated region
        $region21: #{tpu_custom_call.1} parent=19 // pred_check
          %p118 = pneg %p56
        $region22: #{tpu_custom_call.1} parent=19 // pred_check_branch
          %120 = sbr.rel (%p118) target = $region24
        $region23: #{tpu_custom_call.1} parent=19 // pred_region
          %s121 = sand.u32 %s46, 1
          %s122 = scalar_lea.sflag [#allocation6], %s121
          %s123 = sand.u32 %s46, 1
          %s124 = smul.addr %s123, 16
          %s125 = scalar_lea.vmem [#allocation5], %s124
          %s127 = ssub.s32 256, 256
          %128 = vsyncadd %s122, %s127
          %s129 = smul.addr %s15, 64
          %s130 = scalar_lea.hbm %s1, %s129
          %s131 = sshll.u32 %s125, 4
          %s132 = int_to_ptr.vmem [resolvable:$true] %s131
          %137 = dma.hbm_to_vmem [thread:$0]  %s130, 256, %s132, %s122, 128, 64, 4
        $region24: #{tpu_custom_call.1} parent=19 // pred_fallthru
          _
      $region20: #{tpu_custom_call.1} parent=5 // pred_fallthru
        _
      %p138 = scmp.le.s32.totalorder 1, %s15
      %p139 = scmp.lt.s32.totalorder %s15, 3
      %p140 = pnand %p138, %p139
      %p141 = pneg %p140
      // Predicated region
      $region25: #{tpu_custom_call.1} parent=5 // pred_check
        _
      $region26: #{tpu_custom_call.1} parent=5 // pred_check_branch
        %143 = sbr.rel (%p140) target = $region28
      $region27: #{tpu_custom_call.1} parent=5 // pred_region
        %s144 = ssub.s32 %s15, 1
        // Predicated region
        $region29: #{tpu_custom_call.1} parent=27 // pred_check
          %p145 = pneg %p36
        $region30: #{tpu_custom_call.1} parent=27 // pred_check_branch
          %147 = sbr.rel (%p145) target = $region32
        $region31: #{tpu_custom_call.1} parent=27 // pred_region
          %148 = dma.done [#allocation3], 64
        $region32: #{tpu_custom_call.1} parent=27 // pred_fallthru
          _
        %s149 = sand.u32 %s49, 1
        %s150 = scalar_lea.sflag [#allocation6], %s149
        %s151 = sand.u32 %s49, 1
        %s152 = smul.addr %s151, 16
        %s153 = scalar_lea.vmem [#allocation5], %s152
        // Predicated region
        $region33: #{tpu_custom_call.1} parent=27 // pred_check
          %p154 = pneg %p62
        $region34: #{tpu_custom_call.1} parent=27 // pred_check_branch
          %156 = sbr.rel (%p154) target = $region36
        $region35: #{tpu_custom_call.1} parent=27 // pred_region
          %157 = dma.done %s150, 256
        $region36: #{tpu_custom_call.1} parent=27 // pred_fallthru
          _
        %p158 = pneg %p36
        %p159 = pneg %p33
        %s160 = sand.u32 %s49, 1
        %s161 = scalar_lea.sflag [#allocation6], %s160
        %s162 = sand.u32 %s49, 1
        %s163 = smul.addr %s162, 16
        %s164 = scalar_lea.vmem [#allocation5], %s163
        %p165 = pneg %p62
        %p166 = pneg %p59
        %p167 = pneg %p88
        %p168 = pneg %p85
        %s169 = sand.u32 %s75, 1
        %s170 = scalar_lea.sflag [#allocation4], %s169
        %s171 = sand.u32 %s75, 1
        %s172 = smul.addr %s171, 4
        %s173 = scalar_lea.vmem [#allocation7], %s172
        %v175 = vld [vmem:[#allocation2] sm:$0xf]
        %v176 = vld [vmem:[%s153] sm:$0xf]
        %v177 = vld [vmem:[%s153 + $0x4] sm:$0xf]
        %v178 = vld [vmem:[%s153 + $0x8] sm:$0xf]
        %v179 = vld [vmem:[%s153 + $0xc] sm:$0xf]
        %v184 = vunpack.c.l.b16 %v176
        %v185 = vunpack.c.l.b16 %v177
        %v186 = vunpack.c.l.b16 %v178
        %v187 = vunpack.c.l.b16 %v179
        %v188 = vpack.c.b16 %v185, %v184
        %v189 = vpack.c.b16 %v187, %v186
        %vm192 = vcmask 261120
        %v194 = vsel %vm192, %v175, 0
        %196 = vmatprep.subr.bf16.mxu0 0
        %197 = vmatpush1.bf16.msra.mxu0 0
        %198 = vmatprep.subr.bf16.mxu0 0
        %199 = vmatpush1.bf16.msra.mxu0 0
        %200 = vmatprep.subr.bf16.mxu0 0
        %201 = vmatpush1.bf16.msra.mxu0 0
        %202 = vmatprep.subr.bf16.mxu0 0
        %203 = vmatpush1.bf16.msra.mxu0 0
        %204 = vmatprep.subr.bf16.mxu0 0
        %205 = vmatpush1.bf16.msra.mxu0 0
        %206 = vmatprep.subr.bf16.mxu0 0
        %207 = vmatpush1.bf16.msra.mxu0 0
        %208 = vmatprep.subr.bf16.mxu0 0
        %209 = vmatpush1.bf16.msra.mxu0 %v189
        %210 = vmatprep.subr.bf16.mxu0 0
        %211 = vmatpush1.bf16.msra.mxu0 %v188
        %212 = vmatprep.subr.bf16.mxu0 0
        %213 = vmatpush2.bf16.msra.mxu0 0
        %214 = vmatprep.subr.bf16.mxu0 0
        %215 = vmatpush2.bf16.msra.mxu0 0
        %216 = vmatprep.subr.bf16.mxu0 0
        %217 = vmatpush2.bf16.msra.mxu0 0
        %218 = vmatprep.subr.bf16.mxu0 0
        %219 = vmatpush2.bf16.msra.mxu0 0
        %220 = vmatprep.subr.bf16.mxu0 0
        %221 = vmatpush2.bf16.msra.mxu0 0
        %222 = vmatprep.subr.bf16.mxu0 0
        %223 = vmatpush2.bf16.msra.mxu0 0
        %224 = vmatprep.subr.bf16.mxu0 0
        %225 = vmatpush2.bf16.msra.mxu0 0
        %226 = vmatprep.subr.bf16.mxu0 0
        %227 = vmatpush2.bf16.msra.mxu0 0
        %228 = vmatprep.mubr.bf16.mxu0 0
        %229 = vmatmul.mubr.bf16.gmra.mxu0 %v194
        %v230 = vpop.f32.mrf.mxu0
        %v231 = vadd.f32 0.0, %v230
        %v232 = vpop.f32.mrf.mxu0
        %v233 = vpop.f32.mrf.mxu0
        %v234 = vpop.f32.mrf.mxu0
        %235 = vdwg.mxu0
        %v236 = vxor.u32 %v231, 2147483648
        %v237 = vmul.f32 %v236, 1.442695
        %v238 = vpow.pop %v237
        %v239 = vadd.f32 %v238, 1.0
        %v240 = vrcp.pop %v239
        %v241 = vmul.f32 1.0, %v240
        %v242 = vpack.c.bf16 %v241, %v241
        %243 = vst [vmem:[%s173] sm:$0xf] %v242
        %s244 = sand.u32 %s75, 1
        %s245 = scalar_lea.sflag [#allocation4], %s244
        %s246 = sand.u32 %s75, 1
        %s247 = smul.addr %s246, 4
        %s248 = scalar_lea.vmem [#allocation7], %s247
        // Predicated region
        $region37: #{tpu_custom_call.1} parent=27 // pred_check
          %p249 = pneg %p85
        $region38: #{tpu_custom_call.1} parent=27 // pred_check_branch
          %251 = sbr.rel (%p249) target = $region40
        $region39: #{tpu_custom_call.1} parent=27 // pred_region
          %s253 = ssub.s32 64, 64
          %254 = vsyncadd %s245, %s253
          %s255 = smul.addr %s20, 64
          %s256 = scalar_lea.hbm %s2, %s255
          %s258 = sshll.u32 %s248, 4
          %s259 = int_to_ptr.vmem [resolvable:$true] %s258
          %261 = dma.vmem_to_hbm [thread:$0]  %s259, 64, %s256, %s245
        $region40: #{tpu_custom_call.1} parent=27 // pred_fallthru
          _
      $region28: #{tpu_custom_call.1} parent=5 // pred_fallthru
        _
      %p262 = scmp.le.s32.totalorder 2, %s15
      // Predicated region
      $region41: #{tpu_custom_call.1} parent=5 // pred_check
        %p263 = pneg %p262
      $region42: #{tpu_custom_call.1} parent=5 // pred_check_branch
        %265 = sbr.rel (%p263) target = $region44
      $region43: #{tpu_custom_call.1} parent=5 // pred_region
        %s266 = ssub.s32 %s15, 2
        // Predicated region
        $region45: #{tpu_custom_call.1} parent=43 // pred_check
          %p267 = pneg %p91
        $region46: #{tpu_custom_call.1} parent=43 // pred_check_branch
          %269 = sbr.rel (%p267) target = $region48
        $region47: #{tpu_custom_call.1} parent=43 // pred_region
          %s270 = sand.u32 %s76, 1
          %s271 = scalar_lea.sflag [#allocation4], %s270
          %s272 = sand.u32 %s76, 1
          %s273 = smul.addr %s272, 4
          %s274 = scalar_lea.vmem [#allocation7], %s273
          %275 = dma.done %s271, 64
        $region48: #{tpu_custom_call.1} parent=43 // pred_fallthru
          _
      $region44: #{tpu_custom_call.1} parent=5 // pred_fallthru
        _
    $region6: #{tpu_custom_call.1} parent=1 // loop_footer
      %s19 = sadd.s32 1, %s15
    $region7: #{tpu_custom_call.1} parent=1 // loop_footer_branch
      %14 = sbr.rel target = $region3
    $region8: #{tpu_custom_call.1} parent=1 // loop_exit
      _
    %276 = vsyncpa [#allocation3], 1
    %s277 = scalar_lea.sflag [#allocation3], 1
    %278 = vsyncpa %s277, 1
    %279 = vsyncpa [#allocation6], 1
    %s280 = scalar_lea.sflag [#allocation6], 1
    %281 = vsyncpa %s280, 1
    %282 = vsyncpa [#allocation4], 1
    %s283 = scalar_lea.sflag [#allocation4], 1
    %284 = vsyncpa %s283, 1

</llo_original>
